<compile_context>
chip_gen: v7x
topology: tpu7x:2x2x1
jax: 0.10.0
libtpu: 0.0.40
codegen_flags: <defaults>
</compile_context>

<pallas_src>
import functools

import jax
import jax.numpy as jnp
from jax.experimental import pallas as pl
from jax.experimental.pallas import tpu as pltpu


def _round_up(n: int, m: int) -> int:
    return ((n + m - 1) // m) * m


def _pick_tile(n: int, candidates) -> int:
    for c in candidates:
        if c <= n and n % c == 0:
            return c
    return n


def _vmem_capacity_bytes() -> int:
    # Generation-aware budget (v5e/v6e: 128 MiB, v7x: 64 MiB per TC); safe fallback.
    try:
        return int(pltpu.get_tpu_info().vmem_capacity_bytes)
    except Exception:
        return 64 * 1024 * 1024


_VMEM_CAP = _vmem_capacity_bytes()
_VMEM_LIMIT = min((_VMEM_CAP * 3) // 4, 112 * 1024 * 1024)


# ---------------------------------------------------------------------------
# Kernel 1a: fully VMEM-resident fused propagation (all K steps, one launch).
#   A is bf16 (read from HBM once); accumulation / blend stay f32 via
#   preferred_element_type, x is re-cast to bf16 only as the MXU operand.
# ---------------------------------------------------------------------------
def _fused_prop_kernel(a_ref, x0_ref, o_ref, *, K, alpha):
    a = a_ref[...]                                  # bf16 (n, n), VMEM resident
    x0 = x0_ref[...]                                # f32 (n, d)
    x = x0
    for _ in range(K):                              # K small & static -> unrolled
        ax = jnp.dot(a, x.astype(jnp.bfloat16), preferred_element_type=jnp.float32)
        x = (1.0 - alpha) * ax + alpha * x0
    o_ref[...] = x


def propagate_fused(a_bf16, x0, K, alpha, *, vmem_limit=_VMEM_LIMIT):
    n, d = x0.shape
    kernel = functools.partial(_fused_prop_kernel, K=int(K), alpha=float(alpha))
    return pl.pallas_call(
        kernel,
        out_shape=jax.ShapeDtypeStruct((n, d), jnp.float32),
        grid=(1,),
        in_specs=[
            pl.BlockSpec((n, n), lambda i: (0, 0)),   # bf16 A, resident
            pl.BlockSpec((n, d), lambda i: (0, 0)),   # f32 x0, resident
        ],
        out_specs=pl.BlockSpec((n, d), lambda i: (0, 0)),
        compiler_params=pltpu.CompilerParams(
            dimension_semantics=("arbitrary",),
            vmem_limit_bytes=vmem_limit,
        ),
    )(a_bf16, x0)


# ---------------------------------------------------------------------------
# Kernel 1b: one streaming propagation step for large N.
#   - bf16 A streamed in large (tm, tk) tiles (>= a few MiB per grid step).
#   - x is passed pre-cast to bf16 by the wrapper and kept fully VMEM-resident.
#   - x0 / output are (tm, d) row tiles; accumulation directly into the f32 output.
# ---------------------------------------------------------------------------
def _prop_step_kernel(a_ref, x_ref, x0_ref, o_ref, *, alpha, tk):
    k = pl.program_id(1)

    @pl.when(k == 0)
    def _():
        o_ref[...] = jnp.zeros_like(o_ref)

    koff = pl.multiple_of(k * tk, tk)
    x_blk = x_ref[pl.ds(koff, tk), :]               # bf16, already resident
    o_ref[...] += jnp.dot(a_ref[...], x_blk, preferred_element_type=jnp.float32)

    @pl.when(k == pl.num_programs(1) - 1)
    def _():
        o_ref[...] = (1.0 - alpha) * o_ref[...] + alpha * x0_ref[...]


def propagation_step_streaming(a_bf16, x_bf16, x0, alpha, *, tm=None, tk=None,
                               vmem_limit=_VMEM_LIMIT):
    n, d = x0.shape
    budget = int(vmem_limit * 0.8)
    resident_x = 2 * n * d * 2                      # bf16 x, double-buffered by Pallas
    if tk is None:
        tk = _pick_tile(n, (4096, 2048, 1024, 512, 256, 128))
    if tm is None:
        tm = 8
        for c in (1024, 512, 256, 128, 64, 32, 16, 8):
            if c <= n and n % c == 0:
                tile_bytes = 2 * c * tk * 2 + 4 * c * d * 4   # A tiles + x0/out tiles
                if resident_x + tile_bytes <= budget:
                    tm = c
                    break
    grid = (n // tm, n // tk)
    kernel = functools.partial(_prop_step_kernel, alpha=float(alpha), tk=tk)
    return pl.pallas_call(
        kernel,
        out_shape=jax.ShapeDtypeStruct((n, d), jnp.float32),
        grid_spec=pltpu.PrefetchScalarGridSpec(
            num_scalar_prefetch=0,
            grid=grid,
            in_specs=[
                pl.BlockSpec((tm, tk), lambda i, k: (i, k)),  # A tile (streamed, bf16)
                pl.BlockSpec((n, d), lambda i, k: (0, 0)),    # x  (VMEM resident, bf16)
                pl.BlockSpec((tm, d), lambda i, k: (i, 0)),   # x0 row tile (f32)
            ],
            out_specs=pl.BlockSpec((tm, d), lambda i, k: (i, 0)),
        ),
        compiler_params=pltpu.CompilerParams(
            dimension_semantics=("parallel", "arbitrary"),
            vmem_limit_bytes=vmem_limit,
        ),
    )(a_bf16, x_bf16, x0)


# ---------------------------------------------------------------------------
# Kernel 2: fused gather + score.
#   gamma[b] = sum(all_emb[users[b]] * all_emb[num_users + items[b]], axis=-1)
# The embedding table stays in HBM (pl.ANY); only 2*B rows are DMA'd into VMEM
# scratch (all DMAs issued before any wait), then one multiply + row reduce.
# ---------------------------------------------------------------------------
def _gather_score_kernel(uid_ref, iid_ref, emb_hbm, o_ref, u_buf, i_buf, sem,
                         *, num_users, batch):
    copies = []
    for b in range(batch):                          # small static batch -> unrolled
        u_cp = pltpu.make_async_copy(emb_hbm.at[pl.ds(uid_ref[b], 1)],
                                     u_buf.at[pl.ds(b, 1)], sem.at[0, b])
        i_cp = pltpu.make_async_copy(emb_hbm.at[pl.ds(num_users + iid_ref[b], 1)],
                                     i_buf.at[pl.ds(b, 1)], sem.at[1, b])
        u_cp.start()
        i_cp.start()
        copies.append((u_cp, i_cp))
    for u_cp, i_cp in copies:
        u_cp.wait()
        i_cp.wait()
    prod = u_buf[...] * i_buf[...]                  # one fused multiply + row reduce
    o_ref[...] = jnp.sum(prod, axis=-1, keepdims=True)


def gather_score(all_emb, users, items, *, num_users):
    n_pad, d = all_emb.shape
    b = users.shape[0]
    bp = _round_up(b, 8)
    kernel = functools.partial(_gather_score_kernel,
                               num_users=int(num_users), batch=int(b))
    out = pl.pallas_call(
        kernel,
        out_shape=jax.ShapeDtypeStruct((bp, 1), jnp.float32),
        grid_spec=pltpu.PrefetchScalarGridSpec(
            num_scalar_prefetch=2,
            grid=(1,),
            in_specs=[pl.BlockSpec(memory_space=pl.ANY)],     # emb stays in HBM
            out_specs=pl.BlockSpec((bp, 1), lambda i, u, it: (0, 0)),
            scratch_shapes=[
                pltpu.VMEM((bp, d), jnp.float32),
                pltpu.VMEM((bp, d), jnp.float32),
                pltpu.SemaphoreType.DMA((2, b)),
            ],
        ),
        compiler_params=pltpu.CompilerParams(
            dimension_semantics=("arbitrary",),
        ),
    )(users.astype(jnp.int32), items.astype(jnp.int32), all_emb)
    return out[:b, 0]


# ---------------------------------------------------------------------------
# Glue: graph construction + GTN module
# ---------------------------------------------------------------------------
def build_normalized_graph(interactions, n_pad):
    """LightGCN-style symmetric-normalized bipartite adjacency, zero-padded to n_pad."""
    nu, ni = interactions.shape
    n = nu + ni
    adj = jnp.zeros((n_pad, n_pad), dtype=jnp.float32)
    adj = adj.at[:nu, nu:n].set(interactions)
    adj = adj.at[nu:n, :nu].set(interactions.T)
    deg = jnp.sum(adj, axis=1)
    d_inv_sqrt = jnp.where(deg > 0, 1.0 / jnp.sqrt(deg), 0.0)
    return adj * d_inv_sqrt[:, None] * d_inv_sqrt[None, :]


class GTNPallas:
    """JAX/Pallas port of GTN.forward (propagation + dot-product scoring)."""

    def __init__(self, num_users, num_items, latent_dim, K, alpha, key):
        self.num_users = num_users
        self.num_items = num_items
        self.latent_dim = latent_dim
        self.K = int(K)
        self.alpha = float(alpha)
        self.n_nodes = num_users + num_items
        self.n_pad = _round_up(self.n_nodes, 256)        # tile-align once at build time
        self.d_pad = _round_up(latent_dim, 128)          # lane-dense last dim everywhere

        k_user, k_item, k_graph = jax.random.split(key, 3)
        # nn.init.normal_(..., std=0.1)
        self.user_emb = 0.1 * jax.random.normal(k_user, (num_users, latent_dim), jnp.float32)
        self.item_emb = 0.1 * jax.random.normal(k_item, (num_items, latent_dim), jnp.float32)
        # synthetic deterministic interactions (replaces dataset.getSparseGraph)
        interactions = (jax.random.uniform(k_graph, (num_users, num_items)) < 0.05).astype(jnp.float32)
        self.graph = build_normalized_graph(interactions, self.n_pad)   # f32 (reference)
        self.graph_bf16 = self.graph.astype(jnp.bfloat16)               # build-time cast
        # TODO(synk): on v7x the streaming path could use fp8 A (per-row scale) for 2x
        # less HBM traffic; not implemented here to stay portable to v5e/v6e.

        # VMEM budgeting that accounts for Pallas double-buffering of the inputs.
        a_bytes = self.n_pad * self.n_pad * 2            # bf16 A
        x_bytes = self.n_pad * self.d_pad * 4            # f32 x / x0 / out
        self._resident = (2 * a_bytes + 8 * x_bytes) <= int(_VMEM_CAP * 0.55)

        n_pad, d_pad = self.n_pad, self.d_pad
        K_, alpha_, resident = self.K, self.alpha, self._resident

        def _propagate(graph_bf16, user_emb, item_emb):
            x0 = jnp.concatenate([user_emb, item_emb], axis=0)
            x0 = jnp.pad(x0, ((0, n_pad - x0.shape[0]), (0, d_pad - x0.shape[1])))
            if resident:
                return propagate_fused(graph_bf16, x0, K_, alpha_)
            x = x0
            for _ in range(K_):
                x = propagation_step_streaming(graph_bf16, x.astype(jnp.bfloat16), x0, alpha_)
            return x

        # JIT the whole propagation (concat/pad + K steps) and the scoring path,
        # and cache the propagated embeddings between scoring calls (cached=True).
        self._propagate = jax.jit(_propagate)
        self._score = jax.jit(functools.partial(gather_score, num_users=num_users))
        self._emb_cache = None

    def _all_emb(self):
        if self._emb_cache is None:
            self._emb_cache = self._propagate(self.graph_bf16, self.user_emb, self.item_emb)
        return self._emb_cache

    def computer(self):
        x = self._all_emb()
        users = x[: self.num_users, : self.latent_dim]
        items = x[self.num_users : self.n_nodes, : self.latent_dim]
        return users, items

    def forward(self, users, items):
        return self._score(self._all_emb(), users, items)


if __name__ == "__main__":
    # Small, TPU-tile-friendly shapes: N = 96 + 160 = 256, D = 64 (padded to 128).
    num_users, num_items, latent_dim = 96, 160, 64
    K, alpha = 3, 0.1

    key = jax.random.PRNGKey(0)
    model = GTNPallas(num_users, num_items, latent_dim, K, alpha, key)

    batch = 8
    k_u, k_i = jax.random.split(jax.random.PRNGKey(1))
    users = jax.random.randint(k_u, (batch,), 0, num_users)
    items = jax.random.randint(k_i, (batch,), 0, num_items)

    gamma = jax.block_until_ready(model.forward(users, items))
    gamma2 = jax.block_until_ready(model.forward(users, items))   # exercises emb cache

    # Cross-check against a plain-JAX f32 reference of the same forward pass.
    n = num_users + num_items
    x0 = jnp.concatenate([model.user_emb, model.item_emb], axis=0)
    a_f32 = model.graph[:n, :n]
    x_ref = x0
    for _ in range(K):
        x_ref = (1.0 - alpha) * (a_f32 @ x_ref) + alpha * x0
    gamma_ref = jnp.sum(x_ref[users] * x_ref[num_users + items], axis=1)

    assert gamma.shape == (batch,)
    assert jnp.allclose(gamma, gamma2)
    # bf16 adjacency / bf16 matmul operands -> relaxed tolerance vs f32 reference.
    assert jnp.allclose(gamma, gamma_ref, atol=1e-2), (gamma, gamma_ref)

    # Also exercise the large-N streaming path (bf16 A tiles, resident bf16 x).
    x0_pad = jnp.pad(x0, ((0, model.n_pad - n), (0, model.d_pad - latent_dim)))
    xs = x0_pad
    for _ in range(K):
        xs = propagation_step_streaming(model.graph_bf16, xs.astype(jnp.bfloat16),
                                        x0_pad, alpha)
    xs = jax.block_until_ready(xs)
    assert jnp.allclose(xs[:n, :latent_dim], x_ref, atol=1e-2), "streaming propagation mismatch"

    print("KERNEL_OK")
</pallas_src>

<mosaic_0001>
module attributes {stable_mosaic.version = 11 : i64} {
  func.func @_fused_prop_kernel(%arg0: i32, %arg1: memref<256x256xbf16, #tpu.memory_space<vmem>>, %arg2: memref<256x128xf32, #tpu.memory_space<vmem>>, %arg3: memref<256x128xf32, #tpu.memory_space<vmem>>) attributes {dimension_semantics = [#tpu.dimension_semantics<arbitrary>], iteration_bounds = array<i64: 1>, scalar_prefetch = 0 : i64, scratch_operands = 0 : i64, tpu.core_type = #tpu.core_type<tc>, window_params = [{pipeline_mode = #tpu.pipeline_mode<synchronous>, transform_indices = @transform_0, window_bounds = array<i64: 256, 256>}, {pipeline_mode = #tpu.pipeline_mode<synchronous>, transform_indices = @transform_1, window_bounds = array<i64: 256, 128>}, {pipeline_mode = #tpu.pipeline_mode<synchronous>, transform_indices = @transform_2, window_bounds = array<i64: 256, 128>}]} {
    %c0 = arith.constant 0 : index
    %c0_0 = arith.constant 0 : index
    %0 = vector.load %arg1[%c0, %c0_0] : memref<256x256xbf16, #tpu.memory_space<vmem>>, vector<256x256xbf16>
    %c0_1 = arith.constant 0 : index
    %c0_2 = arith.constant 0 : index
    %1 = vector.load %arg2[%c0_1, %c0_2] : memref<256x128xf32, #tpu.memory_space<vmem>>, vector<256x128xf32>
    %2 = arith.truncf %1 : vector<256x128xf32> to vector<256x128xbf16>
    %cst = arith.constant dense<0.000000e+00> : vector<256x128xf32>
    %3 = tpu.matmul %0, %2, %cst {dimension_numbers = #tpu.dot_dimension_numbers<[1], [0], [0], [1], [0, 0, 1, 1], [], []>} : vector<256x256xbf16>, vector<256x128xbf16>, vector<256x128xf32> -> vector<256x128xf32>
    %cst_3 = arith.constant 0.899999976 : f32
    %4 = vector.broadcast %cst_3 : f32 to vector<256x128xf32>
    %5 = arith.mulf %4, %3 : vector<256x128xf32>
    %cst_4 = arith.constant 1.000000e-01 : f32
    %6 = vector.broadcast %cst_4 : f32 to vector<256x128xf32>
    %7 = arith.mulf %6, %1 : vector<256x128xf32>
    %8 = arith.addf %5, %7 : vector<256x128xf32>
    %9 = arith.truncf %8 : vector<256x128xf32> to vector<256x128xbf16>
    %cst_5 = arith.constant dense<0.000000e+00> : vector<256x128xf32>
    %10 = tpu.matmul %0, %9, %cst_5 {dimension_numbers = #tpu.dot_dimension_numbers<[1], [0], [0], [1], [0, 0, 1, 1], [], []>} : vector<256x256xbf16>, vector<256x128xbf16>, vector<256x128xf32> -> vector<256x128xf32>
    %cst_6 = arith.constant 0.899999976 : f32
    %11 = vector.broadcast %cst_6 : f32 to vector<256x128xf32>
    %12 = arith.mulf %11, %10 : vector<256x128xf32>
    %cst_7 = arith.constant 1.000000e-01 : f32
    %13 = vector.broadcast %cst_7 : f32 to vector<256x128xf32>
    %14 = arith.mulf %13, %1 : vector<256x128xf32>
    %15 = arith.addf %12, %14 : vector<256x128xf32>
    %16 = arith.truncf %15 : vector<256x128xf32> to vector<256x128xbf16>
    %cst_8 = arith.constant dense<0.000000e+00> : vector<256x128xf32>
    %17 = tpu.matmul %0, %16, %cst_8 {dimension_numbers = #tpu.dot_dimension_numbers<[1], [0], [0], [1], [0, 0, 1, 1], [], []>} : vector<256x256xbf16>, vector<256x128xbf16>, vector<256x128xf32> -> vector<256x128xf32>
    %cst_9 = arith.constant 0.899999976 : f32
    %18 = vector.broadcast %cst_9 : f32 to vector<256x128xf32>
    %19 = arith.mulf %18, %17 : vector<256x128xf32>
    %cst_10 = arith.constant 1.000000e-01 : f32
    %20 = vector.broadcast %cst_10 : f32 to vector<256x128xf32>
    %21 = arith.mulf %20, %1 : vector<256x128xf32>
    %22 = arith.addf %19, %21 : vector<256x128xf32>
    %c0_11 = arith.constant 0 : index
    %c0_12 = arith.constant 0 : index
    %23 = vector.load %arg3[%c0_11, %c0_12] : memref<256x128xf32, #tpu.memory_space<vmem>>, vector<256x128xf32>
    tpu.vector_store %arg3[%c0_11, %c0_12], %22 {strides = array<i32>} : memref<256x128xf32, #tpu.memory_space<vmem>>, vector<256x128xf32>,
    return
  }
  func.func @transform_0(%arg0: i32) -> (i32, i32) {
    %c0_i32 = arith.constant 0 : i32
    %c0_i32_0 = arith.constant 0 : i32
    %c0_i32_1 = arith.constant 0 : i32
    return %c0_i32, %c0_i32_0 : i32, i32
  }
  func.func @transform_1(%arg0: i32) -> (i32, i32) {
    %c0_i32 = arith.constant 0 : i32
    %c0_i32_0 = arith.constant 0 : i32
    %c0_i32_1 = arith.constant 0 : i32
    return %c0_i32, %c0_i32_0 : i32, i32
  }
  func.func @transform_2(%arg0: i32) -> (i32, i32) {
    %c0_i32 = arith.constant 0 : i32
    %c0_i32_0 = arith.constant 0 : i32
    %c0_i32_1 = arith.constant 0 : i32
    return %c0_i32, %c0_i32_0 : i32, i32
  }
}

</mosaic_0001>

<llo_original>
// kernel: _propagate.1
$region0: #{_propagate.1}
  #allocation0 [shape = 'u32[]', space=smem, size = 0x4, offset = 0x4, fixed_abs, tag = 'smem constant byte address 0x4 - core index']
  #allocation1 [shape = 'u32[144,128]{1,0:T(1,128)}', space=vmem, size = 0x12000, scoped, tag = 'internal scratch']
  %s0 = inlined_call_operand.vmem [shape: bf16[256,256], index: 0, kind: input, shape index: {}]
  %s1 = inlined_call_operand.vmem [shape: f32[256,128], index: 1, kind: input, shape index: {}]
  %s2 = inlined_call_operand.hbm [shape: f32[256,128], index: 2, kind: output, shape index: {}]
  %s3 = sld [smem:[#allocation0]]
  $region18: #{_propagate.1} parent=0
    _
  %s5 = ssub.s32 1, %s3
  %s6 = scalar_select 0, %s5, %s3
  $region1: #{_propagate.1} parent=0
    #allocation2 [shape = 'u8[131072]{0}', space=vmem, size = 0x20000, scoped, tag = 'output window, operand 0, single buffered']
    #allocation3 [shape = 's32[1]{0}', space=sflag, size = 0x4, scoped, tag = 'scoped memory for _propagate.1']
    %7 = vsyncpa [#allocation3], 0
    // Predicated region
    $region2: #{_propagate.1} parent=1 // pred_check
      _
    $region3: #{_propagate.1} parent=1 // pred_check_branch
      %9 = sbr.rel (0) target = $region5
    $region4: #{_propagate.1} parent=1 // pred_region
      _
    $region5: #{_propagate.1} parent=1 // pred_fallthru
      _
    // Predicated region
    $region6: #{_propagate.1} parent=1 // pred_check
      _
    $region7: #{_propagate.1} parent=1 // pred_check_branch
      %11 = sbr.rel (0) target = $region9
    $region8: #{_propagate.1} parent=1 // pred_region
      _
    $region9: #{_propagate.1} parent=1 // pred_fallthru
      _
    %v13 = vld [vmem:[%s0] sm:$0xff]
    %v14 = vld [vmem:[%s0 + $0x8] sm:$0xff]
    %v15 = vld [vmem:[%s0 + $0x10] sm:$0xff]
    %v16 = vld [vmem:[%s0 + $0x18] sm:$0xff]
    %v17 = vld [vmem:[%s0 + $0x20] sm:$0xff]
    %v18 = vld [vmem:[%s0 + $0x28] sm:$0xff]
    %v19 = vld [vmem:[%s0 + $0x30] sm:$0xff]
    %v20 = vld [vmem:[%s0 + $0x38] sm:$0xff]
    %v21 = vld [vmem:[%s0 + $0x40] sm:$0xff]
    %v22 = vld [vmem:[%s0 + $0x48] sm:$0xff]
    %v23 = vld [vmem:[%s0 + $0x50] sm:$0xff]
    %v24 = vld [vmem:[%s0 + $0x58] sm:$0xff]
    %v25 = vld [vmem:[%s0 + $0x60] sm:$0xff]
    %v26 = vld [vmem:[%s0 + $0x68] sm:$0xff]
    %v27 = vld [vmem:[%s0 + $0x70] sm:$0xff]
    %v28 = vld [vmem:[%s0 + $0x78] sm:$0xff]
    %v29 = vld [vmem:[%s0 + $0x80] sm:$0xff]
    %v30 = vld [vmem:[%s0 + $0x88] sm:$0xff]
    %v31 = vld [vmem:[%s0 + $0x90] sm:$0xff]
    %v32 = vld [vmem:[%s0 + $0x98] sm:$0xff]
    %v33 = vld [vmem:[%s0 + $0xa0] sm:$0xff]
    %v34 = vld [vmem:[%s0 + $0xa8] sm:$0xff]
    %v35 = vld [vmem:[%s0 + $0xb0] sm:$0xff]
    %v36 = vld [vmem:[%s0 + $0xb8] sm:$0xff]
    %v37 = vld [vmem:[%s0 + $0xc0] sm:$0xff]
    %v38 = vld [vmem:[%s0 + $0xc8] sm:$0xff]
    %v39 = vld [vmem:[%s0 + $0xd0] sm:$0xff]
    %v40 = vld [vmem:[%s0 + $0xd8] sm:$0xff]
    %v41 = vld [vmem:[%s0 + $0xe0] sm:$0xff]
    %v42 = vld [vmem:[%s0 + $0xe8] sm:$0xff]
    %v43 = vld [vmem:[%s0 + $0xf0] sm:$0xff]
    %v44 = vld [vmem:[%s0 + $0xf8] sm:$0xff]
    %v45 = vld [vmem:[%s1] sm:$0xff]
    %v46 = vld [vmem:[%s1 + $0x8] sm:$0xff]
    %v47 = vld [vmem:[%s1 + $0x10] sm:$0xff]
    %v48 = vld [vmem:[%s1 + $0x18] sm:$0xff]
    %v49 = vld [vmem:[%s1 + $0x20] sm:$0xff]
    %v50 = vld [vmem:[%s1 + $0x28] sm:$0xff]
    %v51 = vld [vmem:[%s1 + $0x30] sm:$0xff]
    %v52 = vld [vmem:[%s1 + $0x38] sm:$0xff]
    %v53 = vld [vmem:[%s1 + $0x40] sm:$0xff]
    %v54 = vld [vmem:[%s1 + $0x48] sm:$0xff]
    %v55 = vld [vmem:[%s1 + $0x50] sm:$0xff]
    %v56 = vld [vmem:[%s1 + $0x58] sm:$0xff]
    %v57 = vld [vmem:[%s1 + $0x60] sm:$0xff]
    %v58 = vld [vmem:[%s1 + $0x68] sm:$0xff]
    %v59 = vld [vmem:[%s1 + $0x70] sm:$0xff]
    %v60 = vld [vmem:[%s1 + $0x78] sm:$0xff]
    %v61 = vld [vmem:[%s1 + $0x80] sm:$0xff]
    %v62 = vld [vmem:[%s1 + $0x88] sm:$0xff]
    %v63 = vld [vmem:[%s1 + $0x90] sm:$0xff]
    %v64 = vld [vmem:[%s1 + $0x98] sm:$0xff]
    %v65 = vld [vmem:[%s1 + $0xa0] sm:$0xff]
    %v66 = vld [vmem:[%s1 + $0xa8] sm:$0xff]
    %v67 = vld [vmem:[%s1 + $0xb0] sm:$0xff]
    %v68 = vld [vmem:[%s1 + $0xb8] sm:$0xff]
    %v69 = vld [vmem:[%s1 + $0xc0] sm:$0xff]
    %v70 = vld [vmem:[%s1 + $0xc8] sm:$0xff]
    %v71 = vld [vmem:[%s1 + $0xd0] sm:$0xff]
    %v72 = vld [vmem:[%s1 + $0xd8] sm:$0xff]
    %v73 = vld [vmem:[%s1 + $0xe0] sm:$0xff]
    %v74 = vld [vmem:[%s1 + $0xe8] sm:$0xff]
    %v75 = vld [vmem:[%s1 + $0xf0] sm:$0xff]
    %v76 = vld [vmem:[%s1 + $0xf8] sm:$0xff]
    %v77 = vpack.c.bf16 %v46, %v45
    %v78 = vpack.c.bf16 %v48, %v47
    %v79 = vpack.c.bf16 %v50, %v49
    %v80 = vpack.c.bf16 %v52, %v51
    %v81 = vpack.c.bf16 %v54, %v53
    %v82 = vpack.c.bf16 %v56, %v55
    %v83 = vpack.c.bf16 %v58, %v57
    %v84 = vpack.c.bf16 %v60, %v59
    %v85 = vpack.c.bf16 %v62, %v61
    %v86 = vpack.c.bf16 %v64, %v63
    %v87 = vpack.c.bf16 %v66, %v65
    %v88 = vpack.c.bf16 %v68, %v67
    %v89 = vpack.c.bf16 %v70, %v69
    %v90 = vpack.c.bf16 %v72, %v71
    %v91 = vpack.c.bf16 %v74, %v73
    %v92 = vpack.c.bf16 %v76, %v75
    %v125 = vunpack.c.l.b16 %v13
    %v126 = vunpack.c.h.b16 %v13
    %v127 = vunpack.c.l.b16 %v14
    %v128 = vunpack.c.h.b16 %v14
    %v129 = vunpack.c.l.b16 %v15
    %v130 = vunpack.c.h.b16 %v15
    %v131 = vunpack.c.l.b16 %v16
    %v132 = vunpack.c.h.b16 %v16
    %v133 = vunpack.c.l.b16 %v17
    %v134 = vunpack.c.h.b16 %v17
    %v135 = vunpack.c.l.b16 %v18
    %v136 = vunpack.c.h.b16 %v18
    %v137 = vunpack.c.l.b16 %v19
    %v138 = vunpack.c.h.b16 %v19
    %v139 = vunpack.c.l.b16 %v20
    %v140 = vunpack.c.h.b16 %v20
    %v141 = vunpack.c.l.b16 %v21
    %v142 = vunpack.c.h.b16 %v21
    %v143 = vunpack.c.l.b16 %v22
    %v144 = vunpack.c.h.b16 %v22
    %v145 = vunpack.c.l.b16 %v23
    %v146 = vunpack.c.h.b16 %v23
    %v147 = vunpack.c.l.b16 %v24
    %v148 = vunpack.c.h.b16 %v24
    %v149 = vunpack.c.l.b16 %v25
    %v150 = vunpack.c.h.b16 %v25
    %v151 = vunpack.c.l.b16 %v26
    %v152 = vunpack.c.h.b16 %v26
    %v153 = vunpack.c.l.b16 %v27
    %v154 = vunpack.c.h.b16 %v27
    %v155 = vunpack.c.l.b16 %v28
    %v156 = vunpack.c.h.b16 %v28
    %v157 = vunpack.c.l.b16 %v29
    %v158 = vunpack.c.h.b16 %v29
    %v159 = vunpack.c.l.b16 %v30
    %v160 = vunpack.c.h.b16 %v30
    %v161 = vunpack.c.l.b16 %v31
    %v162 = vunpack.c.h.b16 %v31
    %v163 = vunpack.c.l.b16 %v32
    %v164 = vunpack.c.h.b16 %v32
    %v165 = vunpack.c.l.b16 %v33
    %v166 = vunpack.c.h.b16 %v33
    %v167 = vunpack.c.l.b16 %v34
    %v168 = vunpack.c.h.b16 %v34
    %v169 = vunpack.c.l.b16 %v35
    %v170 = vunpack.c.h.b16 %v35
    %v171 = vunpack.c.l.b16 %v36
    %v172 = vunpack.c.h.b16 %v36
    %v173 = vunpack.c.l.b16 %v37
    %v174 = vunpack.c.h.b16 %v37
    %v175 = vunpack.c.l.b16 %v38
    %v176 = vunpack.c.h.b16 %v38
    %v177 = vunpack.c.l.b16 %v39
    %v178 = vunpack.c.h.b16 %v39
    %v179 = vunpack.c.l.b16 %v40
    %v180 = vunpack.c.h.b16 %v40
    %v181 = vunpack.c.l.b16 %v41
    %v182 = vunpack.c.h.b16 %v41
    %v183 = vunpack.c.l.b16 %v42
    %v184 = vunpack.c.h.b16 %v42
    %v185 = vunpack.c.l.b16 %v43
    %v186 = vunpack.c.h.b16 %v43
    %v187 = vunpack.c.l.b16 %v44
    %v188 = vunpack.c.h.b16 %v44
    %v189 = vpack.c.b16 %v127, %v125
    %v190 = vpack.c.b16 %v128, %v126
    %v191 = vpack.c.b16 %v131, %v129
    %v192 = vpack.c.b16 %v132, %v130
    %v193 = vpack.c.b16 %v135, %v133
    %v194 = vpack.c.b16 %v136, %v134
    %v195 = vpack.c.b16 %v139, %v137
    %v196 = vpack.c.b16 %v140, %v138
    %v197 = vpack.c.b16 %v143, %v141
    %v198 = vpack.c.b16 %v144, %v142
    %v199 = vpack.c.b16 %v147, %v145
    %v200 = vpack.c.b16 %v148, %v146
    %v201 = vpack.c.b16 %v151, %v149
    %v202 = vpack.c.b16 %v152, %v150
    %v203 = vpack.c.b16 %v155, %v153
    %v204 = vpack.c.b16 %v156, %v154
    %v205 = vpack.c.b16 %v159, %v157
    %v206 = vpack.c.b16 %v160, %v158
    %v207 = vpack.c.b16 %v163, %v161
    %v208 = vpack.c.b16 %v164, %v162
    %v209 = vpack.c.b16 %v167, %v165
    %v210 = vpack.c.b16 %v168, %v166
    %v211 = vpack.c.b16 %v171, %v169
    %v212 = vpack.c.b16 %v172, %v170
    %v213 = vpack.c.b16 %v175, %v173
    %v214 = vpack.c.b16 %v176, %v174
    %v215 = vpack.c.b16 %v179, %v177
    %v216 = vpack.c.b16 %v180, %v178
    %v217 = vpack.c.b16 %v183, %v181
    %v218 = vpack.c.b16 %v184, %v182
    %v219 = vpack.c.b16 %v187, %v185
    %v220 = vpack.c.b16 %v188, %v186
    %253 = vmatprep.subr.bf16.mxu0 0
    %254 = vmatpush1.bf16.msra.mxu0 %v77
    %255 = vmatprep.subr.bf16.mxu0 0
    %256 = vmatpush1.bf16.msra.mxu0 %v78
    %257 = vmatprep.subr.bf16.mxu0 0
    %258 = vmatpush1.bf16.msra.mxu0 %v79
    %259 = vmatprep.subr.bf16.mxu0 0
    %260 = vmatpush1.bf16.msra.mxu0 %v80
    %261 = vmatprep.subr.bf16.mxu0 0
    %262 = vmatpush1.bf16.msra.mxu0 %v81
    %263 = vmatprep.subr.bf16.mxu0 0
    %264 = vmatpush1.bf16.msra.mxu0 %v82
    %265 = vmatprep.subr.bf16.mxu0 0
    %266 = vmatpush1.bf16.msra.mxu0 %v83
    %267 = vmatprep.subr.bf16.mxu0 0
    %268 = vmatpush1.bf16.msra.mxu0 %v84
    %269 = vmatprep.subr.bf16.mxu0 0
    %270 = vmatpush1.bf16.msra.mxu0 %v85
    %271 = vmatprep.subr.bf16.mxu0 0
    %272 = vmatpush1.bf16.msra.mxu0 %v86
    %273 = vmatprep.subr.bf16.mxu0 0
    %274 = vmatpush1.bf16.msra.mxu0 %v87
    %275 = vmatprep.subr.bf16.mxu0 0
    %276 = vmatpush1.bf16.msra.mxu0 %v88
    %277 = vmatprep.subr.bf16.mxu0 0
    %278 = vmatpush1.bf16.msra.mxu0 %v89
    %279 = vmatprep.subr.bf16.mxu0 0
    %280 = vmatpush1.bf16.msra.mxu0 %v90
    %281 = vmatprep.subr.bf16.mxu0 0
    %282 = vmatpush1.bf16.msra.mxu0 %v91
    %283 = vmatprep.subr.bf16.mxu0 0
    %284 = vmatpush1.bf16.msra.mxu0 %v92
    %285 = vmatprep.mubr.bf16.mxu0 %v190
    %286 = vmatmul.mubr.bf16.gmra.mrb[0].mxu0 %v189
    %v287 = vpop.f32.mrb[0].mxu0
    %v288 = vadd.f32 0.0, %v287
    %v289 = vpop.f32.mrb[0].mxu0
    %v290 = vpop.f32.mrb[0].mxu0
    %v291 = vadd.f32 0.0, %v290
    %v292 = vpop.f32.mrb[0].mxu0
    %293 = vmatprep.mubr.bf16.mxu0 %v192
    %294 = vmatmul.mubr.bf16.gmra.mrb[0].mxu0 %v191
    %v295 = vpop.f32.mrb[0].mxu0
    %v296 = vadd.f32 0.0, %v295
    %v297 = vpop.f32.mrb[0].mxu0
    %v298 = vpop.f32.mrb[0].mxu0
    %v299 = vadd.f32 0.0, %v298
    %v300 = vpop.f32.mrb[0].mxu0
    %301 = vmatprep.mubr.bf16.mxu0 %v194
    %302 = vmatmul.mubr.bf16.gmra.mrb[0].mxu0 %v193
    %v303 = vpop.f32.mrb[0].mxu0
    %v304 = vadd.f32 0.0, %v303
    %v305 = vpop.f32.mrb[0].mxu0
    %v306 = vpop.f32.mrb[0].mxu0
    %v307 = vadd.f32 0.0, %v306
    %v308 = vpop.f32.mrb[0].mxu0
    %309 = vmatprep.mubr.bf16.mxu0 %v196
    %310 = vmatmul.mubr.bf16.gmra.mrb[0].mxu0 %v195
    %v311 = vpop.f32.mrb[0].mxu0
    %v312 = vadd.f32 0.0, %v311
    %v313 = vpop.f32.mrb[0].mxu0
    %v314 = vpop.f32.mrb[0].mxu0
    %v315 = vadd.f32 0.0, %v314
    %v316 = vpop.f32.mrb[0].mxu0
    %317 = vmatprep.mubr.bf16.mxu0 %v198
    %318 = vmatmul.mubr.bf16.gmra.mrb[0].mxu0 %v197
    %v319 = vpop.f32.mrb[0].mxu0
    %v320 = vadd.f32 0.0, %v319
    %v321 = vpop.f32.mrb[0].mxu0
    %v322 = vpop.f32.mrb[0].mxu0
    %v323 = vadd.f32 0.0, %v322
    %v324 = vpop.f32.mrb[0].mxu0
    %325 = vmatprep.mubr.bf16.mxu0 %v200
    %326 = vmatmul.mubr.bf16.gmra.mrb[0].mxu0 %v199
    %v327 = vpop.f32.mrb[0].mxu0
    %v328 = vadd.f32 0.0, %v327
    %v329 = vpop.f32.mrb[0].mxu0
    %v330 = vpop.f32.mrb[0].mxu0
    %v331 = vadd.f32 0.0, %v330
    %v332 = vpop.f32.mrb[0].mxu0
    %333 = vmatprep.mubr.bf16.mxu0 %v202
    %334 = vmatmul.mubr.bf16.gmra.mrb[0].mxu0 %v201
    %v335 = vpop.f32.mrb[0].mxu0
    %v336 = vadd.f32 0.0, %v335
    %v337 = vpop.f32.mrb[0].mxu0
    %v338 = vpop.f32.mrb[0].mxu0
    %v339 = vadd.f32 0.0, %v338
    %v340 = vpop.f32.mrb[0].mxu0
    %341 = vmatprep.mubr.bf16.mxu0 %v204
    %342 = vmatmul.mubr.bf16.gmra.mrb[0].mxu0 %v203
    %v343 = vpop.f32.mrb[0].mxu0
    %v344 = vadd.f32 0.0, %v343
    %v345 = vpop.f32.mrb[0].mxu0
    %v346 = vpop.f32.mrb[0].mxu0
    %v347 = vadd.f32 0.0, %v346
    %v348 = vpop.f32.mrb[0].mxu0
    %349 = vmatprep.mubr.bf16.mxu0 %v206
    %350 = vmatmul.mubr.bf16.gmra.mrb[0].mxu0 %v205
    %v351 = vpop.f32.mrb[0].mxu0
    %v352 = vadd.f32 0.0, %v351
    %v353 = vpop.f32.mrb[0].mxu0
    %v354 = vpop.f32.mrb[0].mxu0
    %v355 = vadd.f32 0.0, %v354
    %v356 = vpop.f32.mrb[0].mxu0
    %357 = vmatprep.mubr.bf16.mxu0 %v208
    %358 = vmatmul.mubr.bf16.gmra.mrb[0].mxu0 %v207
    %v359 = vpop.f32.mrb[0].mxu0
    %v360 = vadd.f32 0.0, %v359
    %v361 = vpop.f32.mrb[0].mxu0
    %v362 = vpop.f32.mrb[0].mxu0
    %v363 = vadd.f32 0.0, %v362
    %v364 = vpop.f32.mrb[0].mxu0
    %365 = vmatprep.mubr.bf16.mxu0 %v210
    %366 = vmatmul.mubr.bf16.gmra.mrb[0].mxu0 %v209
    %v367 = vpop.f32.mrb[0].mxu0
    %v368 = vadd.f32 0.0, %v367
    %v369 = vpop.f32.mrb[0].mxu0
    %v370 = vpop.f32.mrb[0].mxu0
    %v371 = vadd.f32 0.0, %v370
    %v372 = vpop.f32.mrb[0].mxu0
    %373 = vmatprep.mubr.bf16.mxu0 %v212
    %374 = vmatmul.mubr.bf16.gmra.mrb[0].mxu0 %v211
    %v375 = vpop.f32.mrb[0].mxu0
    %v376 = vadd.f32 0.0, %v375
    %v377 = vpop.f32.mrb[0].mxu0
    %v378 = vpop.f32.mrb[0].mxu0
    %v379 = vadd.f32 0.0, %v378
    %v380 = vpop.f32.mrb[0].mxu0
    %381 = vmatprep.mubr.bf16.mxu0 %v214
    %382 = vmatmul.mubr.bf16.gmra.mrb[0].mxu0 %v213
    %v383 = vpop.f32.mrb[0].mxu0
    %v384 = vadd.f32 0.0, %v383
    %v385 = vpop.f32.mrb[0].mxu0
    %v386 = vpop.f32.mrb[0].mxu0
    %v387 = vadd.f32 0.0, %v386
    %v388 = vpop.f32.mrb[0].mxu0
    %389 = vmatprep.mubr.bf16.mxu0 %v216
    %390 = vmatmul.mubr.bf16.gmra.mrb[0].mxu0 %v215
    %v391 = vpop.f32.mrb[0].mxu0
    %v392 = vadd.f32 0.0, %v391
    %v393 = vpop.f32.mrb[0].mxu0
    %v394 = vpop.f32.mrb[0].mxu0
    %v395 = vadd.f32 0.0, %v394
    %v396 = vpop.f32.mrb[0].mxu0
    %397 = vmatprep.mubr.bf16.mxu0 %v218
    %398 = vmatmul.mubr.bf16.gmra.mrb[0].mxu0 %v217
    %v399 = vpop.f32.mrb[0].mxu0
    %v400 = vadd.f32 0.0, %v399
    %v401 = vpop.f32.mrb[0].mxu0
    %v402 = vpop.f32.mrb[0].mxu0
    %v403 = vadd.f32 0.0, %v402
    %v404 = vpop.f32.mrb[0].mxu0
    %405 = vmatprep.mubr.bf16.mxu0 %v220
    %406 = vmatmul.mubr.bf16.gmra.mrb[0].mxu0 %v219
    %v407 = vpop.f32.mrb[0].mxu0
    %v408 = vadd.f32 0.0, %v407
    %v409 = vpop.f32.mrb[0].mxu0
    %v410 = vpop.f32.mrb[0].mxu0
    %v411 = vadd.f32 0.0, %v410
    %v412 = vpop.f32.mrb[0].mxu0
    %413 = vdwg.mxu0
    %v414 = vmul.f32 %v288, 0.9
    %v415 = vmul.f32 %v291, 0.9
    %v416 = vmul.f32 %v296, 0.9
    %v417 = vmul.f32 %v299, 0.9
    %v418 = vmul.f32 %v304, 0.9
    %v419 = vmul.f32 %v307, 0.9
    %v420 = vmul.f32 %v312, 0.9
    %v421 = vmul.f32 %v315, 0.9
    %v422 = vmul.f32 %v320, 0.9
    %v423 = vmul.f32 %v323, 0.9
    %v424 = vmul.f32 %v328, 0.9
    %v425 = vmul.f32 %v331, 0.9
    %v426 = vmul.f32 %v336, 0.9
    %v427 = vmul.f32 %v339, 0.9
    %v428 = vmul.f32 %v344, 0.9
    %v429 = vmul.f32 %v347, 0.9
    %v430 = vmul.f32 %v352, 0.9
    %v431 = vmul.f32 %v355, 0.9
    %v432 = vmul.f32 %v360, 0.9
    %v433 = vmul.f32 %v363, 0.9
    %v434 = vmul.f32 %v368, 0.9
    %v435 = vmul.f32 %v371, 0.9
    %v436 = vmul.f32 %v376, 0.9
    %v437 = vmul.f32 %v379, 0.9
    %v438 = vmul.f32 %v384, 0.9
    %v439 = vmul.f32 %v387, 0.9
    %v440 = vmul.f32 %v392, 0.9
    %v441 = vmul.f32 %v395, 0.9
    %v442 = vmul.f32 %v400, 0.9
    %v443 = vmul.f32 %v403, 0.9
    %v444 = vmul.f32 %v408, 0.9
    %v445 = vmul.f32 %v411, 0.9
    %v446 = vmul.f32 %v45, 0.1
    %v447 = vmul.f32 %v46, 0.1
    %v448 = vmul.f32 %v47, 0.1
    %v449 = vmul.f32 %v48, 0.1
    %v450 = vmul.f32 %v49, 0.1
    %v451 = vmul.f32 %v50, 0.1
    %v452 = vmul.f32 %v51, 0.1
    %v453 = vmul.f32 %v52, 0.1
    %v454 = vmul.f32 %v53, 0.1
    %v455 = vmul.f32 %v54, 0.1
    %v456 = vmul.f32 %v55, 0.1
    %v457 = vmul.f32 %v56, 0.1
    %v458 = vmul.f32 %v57, 0.1
    %v459 = vmul.f32 %v58, 0.1
    %v460 = vmul.f32 %v59, 0.1
    %v461 = vmul.f32 %v60, 0.1
    %v462 = vmul.f32 %v61, 0.1
    %v463 = vmul.f32 %v62, 0.1
    %v464 = vmul.f32 %v63, 0.1
    %v465 = vmul.f32 %v64, 0.1
    %v466 = vmul.f32 %v65, 0.1
    %v467 = vmul.f32 %v66, 0.1
    %v468 = vmul.f32 %v67, 0.1
    %v469 = vmul.f32 %v68, 0.1
    %v470 = vmul.f32 %v69, 0.1
    %v471 = vmul.f32 %v70, 0.1
    %v472 = vmul.f32 %v71, 0.1
    %v473 = vmul.f32 %v72, 0.1
    %v474 = vmul.f32 %v73, 0.1
    %v475 = vmul.f32 %v74, 0.1
    %v476 = vmul.f32 %v75, 0.1
    %v477 = vmul.f32 %v76, 0.1
    %v478 = vadd.f32 %v414, %v446
    %v479 = vadd.f32 %v415, %v447
    %v480 = vadd.f32 %v416, %v448
    %v481 = vadd.f32 %v417, %v449
    %v482 = vadd.f32 %v418, %v450
    %v483 = vadd.f32 %v419, %v451
    %v484 = vadd.f32 %v420, %v452
    %v485 = vadd.f32 %v421, %v453
    %v486 = vadd.f32 %v422, %v454
    %v487 = vadd.f32 %v423, %v455
    %v488 = vadd.f32 %v424, %v456
    %v489 = vadd.f32 %v425, %v457
    %v490 = vadd.f32 %v426, %v458
    %v491 = vadd.f32 %v427, %v459
    %v492 = vadd.f32 %v428, %v460
    %v493 = vadd.f32 %v429, %v461
    %v494 = vadd.f32 %v430, %v462
    %v495 = vadd.f32 %v431, %v463
    %v496 = vadd.f32 %v432, %v464
    %v497 = vadd.f32 %v433, %v465
    %v498 = vadd.f32 %v434, %v466
    %v499 = vadd.f32 %v435, %v467
    %v500 = vadd.f32 %v436, %v468
    %v501 = vadd.f32 %v437, %v469
    %v502 = vadd.f32 %v438, %v470
    %v503 = vadd.f32 %v439, %v471
    %v504 = vadd.f32 %v440, %v472
    %v505 = vadd.f32 %v441, %v473
    %v506 = vadd.f32 %v442, %v474
    %v507 = vadd.f32 %v443, %v475
    %v508 = vadd.f32 %v444, %v476
    %v509 = vadd.f32 %v445, %v477
    %v510 = vpack.c.bf16 %v479, %v478
    %v511 = vpack.c.bf16 %v481, %v480
    %v512 = vpack.c.bf16 %v483, %v482
    %v513 = vpack.c.bf16 %v485, %v484
    %v514 = vpack.c.bf16 %v487, %v486
    %v515 = vpack.c.bf16 %v489, %v488
    %v516 = vpack.c.bf16 %v491, %v490
    %v517 = vpack.c.bf16 %v493, %v492
    %v518 = vpack.c.bf16 %v495, %v494
    %v519 = vpack.c.bf16 %v497, %v496
    %v520 = vpack.c.bf16 %v499, %v498
    %v521 = vpack.c.bf16 %v501, %v500
    %v522 = vpack.c.bf16 %v503, %v502
    %v523 = vpack.c.bf16 %v505, %v504
    %v524 = vpack.c.bf16 %v507, %v506
    %v525 = vpack.c.bf16 %v509, %v508
    %526 = vmatprep.subr.bf16.mxu0 0
    %527 = vmatpush1.bf16.msra.mxu0 %v510
    %528 = vmatprep.subr.bf16.mxu0 0
    %529 = vmatpush1.bf16.msra.mxu0 %v511
    %530 = vmatprep.subr.bf16.mxu0 0
    %531 = vmatpush1.bf16.msra.mxu0 %v512
    %532 = vmatprep.subr.bf16.mxu0 0
    %533 = vmatpush1.bf16.msra.mxu0 %v513
    %534 = vmatprep.subr.bf16.mxu0 0
    %535 = vmatpush1.bf16.msra.mxu0 %v514
    %536 = vmatprep.subr.bf16.mxu0 0
    %537 = vmatpush1.bf16.msra.mxu0 %v515
    %538 = vmatprep.subr.bf16.mxu0 0
    %539 = vmatpush1.bf16.msra.mxu0 %v516
    %540 = vmatprep.subr.bf16.mxu0 0
    %541 = vmatpush1.bf16.msra.mxu0 %v517
    %542 = vmatprep.subr.bf16.mxu0 0
    %543 = vmatpush1.bf16.msra.mxu0 %v518
    %544 = vmatprep.subr.bf16.mxu0 0
    %545 = vmatpush1.bf16.msra.mxu0 %v519
    %546 = vmatprep.subr.bf16.mxu0 0
    %547 = vmatpush1.bf16.msra.mxu0 %v520
    %548 = vmatprep.subr.bf16.mxu0 0
    %549 = vmatpush1.bf16.msra.mxu0 %v521
    %550 = vmatprep.subr.bf16.mxu0 0
    %551 = vmatpush1.bf16.msra.mxu0 %v522
    %552 = vmatprep.subr.bf16.mxu0 0
    %553 = vmatpush1.bf16.msra.mxu0 %v523
    %554 = vmatprep.subr.bf16.mxu0 0
    %555 = vmatpush1.bf16.msra.mxu0 %v524
    %556 = vmatprep.subr.bf16.mxu0 0
    %557 = vmatpush1.bf16.msra.mxu0 %v525
    %558 = vmatprep.mubr.bf16.mxu0 %v190
    %559 = vmatmul.mubr.bf16.gmra.mrb[0].mxu0 %v189
    %v560 = vpop.f32.mrb[0].mxu0
    %v561 = vadd.f32 0.0, %v560
    %v562 = vpop.f32.mrb[0].mxu0
    %v563 = vpop.f32.mrb[0].mxu0
    %v564 = vadd.f32 0.0, %v563
    %v565 = vpop.f32.mrb[0].mxu0
    %566 = vmatprep.mubr.bf16.mxu0 %v192
    %567 = vmatmul.mubr.bf16.gmra.mrb[0].mxu0 %v191
    %v568 = vpop.f32.mrb[0].mxu0
    %v569 = vadd.f32 0.0, %v568
    %v570 = vpop.f32.mrb[0].mxu0
    %v571 = vpop.f32.mrb[0].mxu0
    %v572 = vadd.f32 0.0, %v571
    %v573 = vpop.f32.mrb[0].mxu0
    %574 = vmatprep.mubr.bf16.mxu0 %v194
    %575 = vmatmul.mubr.bf16.gmra.mrb[0].mxu0 %v193
    %v576 = vpop.f32.mrb[0].mxu0
    %v577 = vadd.f32 0.0, %v576
    %v578 = vpop.f32.mrb[0].mxu0
    %v579 = vpop.f32.mrb[0].mxu0
    %v580 = vadd.f32 0.0, %v579
    %v581 = vpop.f32.mrb[0].mxu0
    %582 = vmatprep.mubr.bf16.mxu0 %v196
    %583 = vmatmul.mubr.bf16.gmra.mrb[0].mxu0 %v195
    %v584 = vpop.f32.mrb[0].mxu0
    %v585 = vadd.f32 0.0, %v584
    %v586 = vpop.f32.mrb[0].mxu0
    %v587 = vpop.f32.mrb[0].mxu0
    %v588 = vadd.f32 0.0, %v587
    %v589 = vpop.f32.mrb[0].mxu0
    %590 = vmatprep.mubr.bf16.mxu0 %v198
    %591 = vmatmul.mubr.bf16.gmra.mrb[0].mxu0 %v197
    %v592 = vpop.f32.mrb[0].mxu0
    %v593 = vadd.f32 0.0, %v592
    %v594 = vpop.f32.mrb[0].mxu0
    %v595 = vpop.f32.mrb[0].mxu0
    %v596 = vadd.f32 0.0, %v595
    %v597 = vpop.f32.mrb[0].mxu0
    %598 = vmatprep.mubr.bf16.mxu0 %v200
    %599 = vmatmul.mubr.bf16.gmra.mrb[0].mxu0 %v199
    %v600 = vpop.f32.mrb[0].mxu0
    %v601 = vadd.f32 0.0, %v600
    %v602 = vpop.f32.mrb[0].mxu0
    %v603 = vpop.f32.mrb[0].mxu0
    %v604 = vadd.f32 0.0, %v603
    %v605 = vpop.f32.mrb[0].mxu0
    %606 = vmatprep.mubr.bf16.mxu0 %v202
    %607 = vmatmul.mubr.bf16.gmra.mrb[0].mxu0 %v201
    %v608 = vpop.f32.mrb[0].mxu0
    %v609 = vadd.f32 0.0, %v608
    %v610 = vpop.f32.mrb[0].mxu0
    %v611 = vpop.f32.mrb[0].mxu0
    %v612 = vadd.f32 0.0, %v611
    %v613 = vpop.f32.mrb[0].mxu0
    %614 = vmatprep.mubr.bf16.mxu0 %v204
    %615 = vmatmul.mubr.bf16.gmra.mrb[0].mxu0 %v203
    %v616 = vpop.f32.mrb[0].mxu0
    %v617 = vadd.f32 0.0, %v616
    %v618 = vpop.f32.mrb[0].mxu0
    %v619 = vpop.f32.mrb[0].mxu0
    %v620 = vadd.f32 0.0, %v619
    %v621 = vpop.f32.mrb[0].mxu0
    %622 = vmatprep.mubr.bf16.mxu0 %v206
    %623 = vmatmul.mubr.bf16.gmra.mrb[0].mxu0 %v205
    %v624 = vpop.f32.mrb[0].mxu0
    %v625 = vadd.f32 0.0, %v624
    %v626 = vpop.f32.mrb[0].mxu0
    %v627 = vpop.f32.mrb[0].mxu0
    %v628 = vadd.f32 0.0, %v627
    %v629 = vpop.f32.mrb[0].mxu0
    %630 = vmatprep.mubr.bf16.mxu0 %v208
    %631 = vmatmul.mubr.bf16.gmra.mrb[0].mxu0 %v207
    %v632 = vpop.f32.mrb[0].mxu0
    %v633 = vadd.f32 0.0, %v632
    %v634 = vpop.f32.mrb[0].mxu0
    %v635 = vpop.f32.mrb[0].mxu0
    %v636 = vadd.f32 0.0, %v635
    %v637 = vpop.f32.mrb[0].mxu0
    %638 = vmatprep.mubr.bf16.mxu0 %v210
    %639 = vmatmul.mubr.bf16.gmra.mrb[0].mxu0 %v209
    %v640 = vpop.f32.mrb[0].mxu0
    %v641 = vadd.f32 0.0, %v640
    %v642 = vpop.f32.mrb[0].mxu0
    %v643 = vpop.f32.mrb[0].mxu0
    %v644 = vadd.f32 0.0, %v643
    %v645 = vpop.f32.mrb[0].mxu0
    %646 = vmatprep.mubr.bf16.mxu0 %v212
    %647 = vmatmul.mubr.bf16.gmra.mrb[0].mxu0 %v211
    %v648 = vpop.f32.mrb[0].mxu0
    %v649 = vadd.f32 0.0, %v648
    %v650 = vpop.f32.mrb[0].mxu0
    %v651 = vpop.f32.mrb[0].mxu0
    %v652 = vadd.f32 0.0, %v651
    %v653 = vpop.f32.mrb[0].mxu0
    %654 = vmatprep.mubr.bf16.mxu0 %v214
    %655 = vmatmul.mubr.bf16.gmra.mrb[0].mxu0 %v213
    %v656 = vpop.f32.mrb[0].mxu0
    %v657 = vadd.f32 0.0, %v656
    %v658 = vpop.f32.mrb[0].mxu0
    %v659 = vpop.f32.mrb[0].mxu0
    %v660 = vadd.f32 0.0, %v659
    %v661 = vpop.f32.mrb[0].mxu0
    %662 = vmatprep.mubr.bf16.mxu0 %v216
    %663 = vmatmul.mubr.bf16.gmra.mrb[0].mxu0 %v215
    %v664 = vpop.f32.mrb[0].mxu0
    %v665 = vadd.f32 0.0, %v664
    %v666 = vpop.f32.mrb[0].mxu0
    %v667 = vpop.f32.mrb[0].mxu0
    %v668 = vadd.f32 0.0, %v667
    %v669 = vpop.f32.mrb[0].mxu0
    %670 = vmatprep.mubr.bf16.mxu0 %v218
    %671 = vmatmul.mubr.bf16.gmra.mrb[0].mxu0 %v217
    %v672 = vpop.f32.mrb[0].mxu0
    %v673 = vadd.f32 0.0, %v672
    %v674 = vpop.f32.mrb[0].mxu0
    %v675 = vpop.f32.mrb[0].mxu0
    %v676 = vadd.f32 0.0, %v675
    %v677 = vpop.f32.mrb[0].mxu0
    %678 = vmatprep.mubr.bf16.mxu0 %v220
    %679 = vmatmul.mubr.bf16.gmra.mrb[0].mxu0 %v219
    %v680 = vpop.f32.mrb[0].mxu0
    %v681 = vadd.f32 0.0, %v680
    %v682 = vpop.f32.mrb[0].mxu0
    %v683 = vpop.f32.mrb[0].mxu0
    %v684 = vadd.f32 0.0, %v683
    %v685 = vpop.f32.mrb[0].mxu0
    %686 = vdwg.mxu0
    %v687 = vmul.f32 %v561, 0.9
    %v688 = vmul.f32 %v564, 0.9
    %v689 = vmul.f32 %v569, 0.9
    %v690 = vmul.f32 %v572, 0.9
    %v691 = vmul.f32 %v577, 0.9
    %v692 = vmul.f32 %v580, 0.9
    %v693 = vmul.f32 %v585, 0.9
    %v694 = vmul.f32 %v588, 0.9
    %v695 = vmul.f32 %v593, 0.9
    %v696 = vmul.f32 %v596, 0.9
    %v697 = vmul.f32 %v601, 0.9
    %v698 = vmul.f32 %v604, 0.9
    %v699 = vmul.f32 %v609, 0.9
    %v700 = vmul.f32 %v612, 0.9
    %v701 = vmul.f32 %v617, 0.9
    %v702 = vmul.f32 %v620, 0.9
    %v703 = vmul.f32 %v625, 0.9
    %v704 = vmul.f32 %v628, 0.9
    %v705 = vmul.f32 %v633, 0.9
    %v706 = vmul.f32 %v636, 0.9
    %v707 = vmul.f32 %v641, 0.9
    %v708 = vmul.f32 %v644, 0.9
    %v709 = vmul.f32 %v649, 0.9
    %v710 = vmul.f32 %v652, 0.9
    %v711 = vmul.f32 %v657, 0.9
    %v712 = vmul.f32 %v660, 0.9
    %v713 = vmul.f32 %v665, 0.9
    %v714 = vmul.f32 %v668, 0.9
    %v715 = vmul.f32 %v673, 0.9
    %v716 = vmul.f32 %v676, 0.9
    %v717 = vmul.f32 %v681, 0.9
    %v718 = vmul.f32 %v684, 0.9
    %v719 = vadd.f32 %v687, %v446
    %v720 = vadd.f32 %v688, %v447
    %v721 = vadd.f32 %v689, %v448
    %v722 = vadd.f32 %v690, %v449
    %v723 = vadd.f32 %v691, %v450
    %v724 = vadd.f32 %v692, %v451
    %v725 = vadd.f32 %v693, %v452
    %v726 = vadd.f32 %v694, %v453
    %v727 = vadd.f32 %v695, %v454
    %v728 = vadd.f32 %v696, %v455
    %v729 = vadd.f32 %v697, %v456
    %v730 = vadd.f32 %v698, %v457
    %v731 = vadd.f32 %v699, %v458
    %v732 = vadd.f32 %v700, %v459
    %v733 = vadd.f32 %v701, %v460
    %v734 = vadd.f32 %v702, %v461
    %v735 = vadd.f32 %v703, %v462
    %v736 = vadd.f32 %v704, %v463
    %v737 = vadd.f32 %v705, %v464
    %v738 = vadd.f32 %v706, %v465
    %v739 = vadd.f32 %v707, %v466
    %v740 = vadd.f32 %v708, %v467
    %v741 = vadd.f32 %v709, %v468
    %v742 = vadd.f32 %v710, %v469
    %v743 = vadd.f32 %v711, %v470
    %v744 = vadd.f32 %v712, %v471
    %v745 = vadd.f32 %v713, %v472
    %v746 = vadd.f32 %v714, %v473
    %v747 = vadd.f32 %v715, %v474
    %v748 = vadd.f32 %v716, %v475
    %v749 = vadd.f32 %v717, %v476
    %v750 = vadd.f32 %v718, %v477
    %v751 = vpack.c.bf16 %v720, %v719
    %v752 = vpack.c.bf16 %v722, %v721
    %v753 = vpack.c.bf16 %v724, %v723
    %v754 = vpack.c.bf16 %v726, %v725
    %v755 = vpack.c.bf16 %v728, %v727
    %v756 = vpack.c.bf16 %v730, %v729
    %v757 = vpack.c.bf16 %v732, %v731
    %v758 = vpack.c.bf16 %v734, %v733
    %v759 = vpack.c.bf16 %v736, %v735
    %v760 = vpack.c.bf16 %v738, %v737
    %v761 = vpack.c.bf16 %v740, %v739
    %v762 = vpack.c.bf16 %v742, %v741
    %v763 = vpack.c.bf16 %v744, %v743
    %v764 = vpack.c.bf16 %v746, %v745
    %v765 = vpack.c.bf16 %v748, %v747
    %v766 = vpack.c.bf16 %v750, %v749
    %767 = vmatprep.subr.bf16.mxu0 0
    %768 = vmatpush1.bf16.msra.mxu0 %v751
    %769 = vmatprep.subr.bf16.mxu0 0
    %770 = vmatpush1.bf16.msra.mxu0 %v752
    %771 = vmatprep.subr.bf16.mxu0 0
    %772 = vmatpush1.bf16.msra.mxu0 %v753
    %773 = vmatprep.subr.bf16.mxu0 0
    %774 = vmatpush1.bf16.msra.mxu0 %v754
    %775 = vmatprep.subr.bf16.mxu0 0
    %776 = vmatpush1.bf16.msra.mxu0 %v755
    %777 = vmatprep.subr.bf16.mxu0 0
    %778 = vmatpush1.bf16.msra.mxu0 %v756
    %779 = vmatprep.subr.bf16.mxu0 0
    %780 = vmatpush1.bf16.msra.mxu0 %v757
    %781 = vmatprep.subr.bf16.mxu0 0
    %782 = vmatpush1.bf16.msra.mxu0 %v758
    %783 = vmatprep.subr.bf16.mxu0 0
    %784 = vmatpush1.bf16.msra.mxu0 %v759
    %785 = vmatprep.subr.bf16.mxu0 0
    %786 = vmatpush1.bf16.msra.mxu0 %v760
    %787 = vmatprep.subr.bf16.mxu0 0
    %788 = vmatpush1.bf16.msra.mxu0 %v761
    %789 = vmatprep.subr.bf16.mxu0 0
    %790 = vmatpush1.bf16.msra.mxu0 %v762
    %791 = vmatprep.subr.bf16.mxu0 0
    %792 = vmatpush1.bf16.msra.mxu0 %v763
    %793 = vmatprep.subr.bf16.mxu0 0
    %794 = vmatpush1.bf16.msra.mxu0 %v764
    %795 = vmatprep.subr.bf16.mxu0 0
    %796 = vmatpush1.bf16.msra.mxu0 %v765
    %797 = vmatprep.subr.bf16.mxu0 0
    %798 = vmatpush1.bf16.msra.mxu0 %v766
    %799 = vmatprep.mubr.bf16.mxu0 %v190
    %800 = vmatmul.mubr.bf16.gmra.mrb[0].mxu0 %v189
    %v801 = vpop.f32.mrb[0].mxu0
    %v802 = vadd.f32 0.0, %v801
    %v803 = vpop.f32.mrb[0].mxu0
    %v804 = vpop.f32.mrb[0].mxu0
    %v805 = vadd.f32 0.0, %v804
    %v806 = vpop.f32.mrb[0].mxu0
    %807 = vmatprep.mubr.bf16.mxu0 %v192
    %808 = vmatmul.mubr.bf16.gmra.mrb[0].mxu0 %v191
    %v809 = vpop.f32.mrb[0].mxu0
    %v810 = vadd.f32 0.0, %v809
    %v811 = vpop.f32.mrb[0].mxu0
    %v812 = vpop.f32.mrb[0].mxu0
    %v813 = vadd.f32 0.0, %v812
    %v814 = vpop.f32.mrb[0].mxu0
    %815 = vmatprep.mubr.bf16.mxu0 %v194
    %816 = vmatmul.mubr.bf16.gmra.mrb[0].mxu0 %v193
    %v817 = vpop.f32.mrb[0].mxu0
    %v818 = vadd.f32 0.0, %v817
    %v819 = vpop.f32.mrb[0].mxu0
    %v820 = vpop.f32.mrb[0].mxu0
    %v821 = vadd.f32 0.0, %v820
    %v822 = vpop.f32.mrb[0].mxu0
    %823 = vmatprep.mubr.bf16.mxu0 %v196
    %824 = vmatmul.mubr.bf16.gmra.mrb[0].mxu0 %v195
    %v825 = vpop.f32.mrb[0].mxu0
    %v826 = vadd.f32 0.0, %v825
    %v827 = vpop.f32.mrb[0].mxu0
    %v828 = vpop.f32.mrb[0].mxu0
    %v829 = vadd.f32 0.0, %v828
    %v830 = vpop.f32.mrb[0].mxu0
    %831 = vmatprep.mubr.bf16.mxu0 %v198
    %832 = vmatmul.mubr.bf16.gmra.mrb[0].mxu0 %v197
    %v833 = vpop.f32.mrb[0].mxu0
    %v834 = vadd.f32 0.0, %v833
    %v835 = vpop.f32.mrb[0].mxu0
    %v836 = vpop.f32.mrb[0].mxu0
    %v837 = vadd.f32 0.0, %v836
    %v838 = vpop.f32.mrb[0].mxu0
    %839 = vmatprep.mubr.bf16.mxu0 %v200
    %840 = vmatmul.mubr.bf16.gmra.mrb[0].mxu0 %v199
    %v841 = vpop.f32.mrb[0].mxu0
    %v842 = vadd.f32 0.0, %v841
    %v843 = vpop.f32.mrb[0].mxu0
    %v844 = vpop.f32.mrb[0].mxu0
    %v845 = vadd.f32 0.0, %v844
    %v846 = vpop.f32.mrb[0].mxu0
    %847 = vmatprep.mubr.bf16.mxu0 %v202
    %848 = vmatmul.mubr.bf16.gmra.mrb[0].mxu0 %v201
    %v849 = vpop.f32.mrb[0].mxu0
    %v850 = vadd.f32 0.0, %v849
    %v851 = vpop.f32.mrb[0].mxu0
    %v852 = vpop.f32.mrb[0].mxu0
    %v853 = vadd.f32 0.0, %v852
    %v854 = vpop.f32.mrb[0].mxu0
    %855 = vmatprep.mubr.bf16.mxu0 %v204
    %856 = vmatmul.mubr.bf16.gmra.mrb[0].mxu0 %v203
    %v857 = vpop.f32.mrb[0].mxu0
    %v858 = vadd.f32 0.0, %v857
    %v859 = vpop.f32.mrb[0].mxu0
    %v860 = vpop.f32.mrb[0].mxu0
    %v861 = vadd.f32 0.0, %v860
    %v862 = vpop.f32.mrb[0].mxu0
    %863 = vmatprep.mubr.bf16.mxu0 %v206
    %864 = vmatmul.mubr.bf16.gmra.mrb[0].mxu0 %v205
    %v865 = vpop.f32.mrb[0].mxu0
    %v866 = vadd.f32 0.0, %v865
    %v867 = vpop.f32.mrb[0].mxu0
    %v868 = vpop.f32.mrb[0].mxu0
    %v869 = vadd.f32 0.0, %v868
    %v870 = vpop.f32.mrb[0].mxu0
    %871 = vmatprep.mubr.bf16.mxu0 %v208
    %872 = vmatmul.mubr.bf16.gmra.mrb[0].mxu0 %v207
    %v873 = vpop.f32.mrb[0].mxu0
    %v874 = vadd.f32 0.0, %v873
    %v875 = vpop.f32.mrb[0].mxu0
    %v876 = vpop.f32.mrb[0].mxu0
    %v877 = vadd.f32 0.0, %v876
    %v878 = vpop.f32.mrb[0].mxu0
    %879 = vmatprep.mubr.bf16.mxu0 %v210
    %880 = vmatmul.mubr.bf16.gmra.mrb[0].mxu0 %v209
    %v881 = vpop.f32.mrb[0].mxu0
    %v882 = vadd.f32 0.0, %v881
    %v883 = vpop.f32.mrb[0].mxu0
    %v884 = vpop.f32.mrb[0].mxu0
    %v885 = vadd.f32 0.0, %v884
    %v886 = vpop.f32.mrb[0].mxu0
    %887 = vmatprep.mubr.bf16.mxu0 %v212
    %888 = vmatmul.mubr.bf16.gmra.mrb[0].mxu0 %v211
    %v889 = vpop.f32.mrb[0].mxu0
    %v890 = vadd.f32 0.0, %v889
    %v891 = vpop.f32.mrb[0].mxu0
    %v892 = vpop.f32.mrb[0].mxu0
    %v893 = vadd.f32 0.0, %v892
    %v894 = vpop.f32.mrb[0].mxu0
    %895 = vmatprep.mubr.bf16.mxu0 %v214
    %896 = vmatmul.mubr.bf16.gmra.mrb[0].mxu0 %v213
    %v897 = vpop.f32.mrb[0].mxu0
    %v898 = vadd.f32 0.0, %v897
    %v899 = vpop.f32.mrb[0].mxu0
    %v900 = vpop.f32.mrb[0].mxu0
    %v901 = vadd.f32 0.0, %v900
    %v902 = vpop.f32.mrb[0].mxu0
    %903 = vmatprep.mubr.bf16.mxu0 %v216
    %904 = vmatmul.mubr.bf16.gmra.mrb[0].mxu0 %v215
    %v905 = vpop.f32.mrb[0].mxu0
    %v906 = vadd.f32 0.0, %v905
    %v907 = vpop.f32.mrb[0].mxu0
    %v908 = vpop.f32.mrb[0].mxu0
    %v909 = vadd.f32 0.0, %v908
    %v910 = vpop.f32.mrb[0].mxu0
    %911 = vmatprep.mubr.bf16.mxu0 %v218
    %912 = vmatmul.mubr.bf16.gmra.mrb[0].mxu0 %v217
    %v913 = vpop.f32.mrb[0].mxu0
    %v914 = vadd.f32 0.0, %v913
    %v915 = vpop.f32.mrb[0].mxu0
    %v916 = vpop.f32.mrb[0].mxu0
    %v917 = vadd.f32 0.0, %v916
    %v918 = vpop.f32.mrb[0].mxu0
    %919 = vmatprep.mubr.bf16.mxu0 %v220
    %920 = vmatmul.mubr.bf16.gmra.mrb[0].mxu0 %v219
    %v921 = vpop.f32.mrb[0].mxu0
    %v922 = vadd.f32 0.0, %v921
    %v923 = vpop.f32.mrb[0].mxu0
    %v924 = vpop.f32.mrb[0].mxu0
    %v925 = vadd.f32 0.0, %v924
    %v926 = vpop.f32.mrb[0].mxu0
    %927 = vdwg.mxu0
    %v928 = vmul.f32 %v802, 0.9
    %v929 = vmul.f32 %v805, 0.9
    %v930 = vmul.f32 %v810, 0.9
    %v931 = vmul.f32 %v813, 0.9
    %v932 = vmul.f32 %v818, 0.9
    %v933 = vmul.f32 %v821, 0.9
    %v934 = vmul.f32 %v826, 0.9
    %v935 = vmul.f32 %v829, 0.9
    %v936 = vmul.f32 %v834, 0.9
    %v937 = vmul.f32 %v837, 0.9
    %v938 = vmul.f32 %v842, 0.9
    %v939 = vmul.f32 %v845, 0.9
    %v940 = vmul.f32 %v850, 0.9
    %v941 = vmul.f32 %v853, 0.9
    %v942 = vmul.f32 %v858, 0.9
    %v943 = vmul.f32 %v861, 0.9
    %v944 = vmul.f32 %v866, 0.9
    %v945 = vmul.f32 %v869, 0.9
    %v946 = vmul.f32 %v874, 0.9
    %v947 = vmul.f32 %v877, 0.9
    %v948 = vmul.f32 %v882, 0.9
    %v949 = vmul.f32 %v885, 0.9
    %v950 = vmul.f32 %v890, 0.9
    %v951 = vmul.f32 %v893, 0.9
    %v952 = vmul.f32 %v898, 0.9
    %v953 = vmul.f32 %v901, 0.9
    %v954 = vmul.f32 %v906, 0.9
    %v955 = vmul.f32 %v909, 0.9
    %v956 = vmul.f32 %v914, 0.9
    %v957 = vmul.f32 %v917, 0.9
    %v958 = vmul.f32 %v922, 0.9
    %v959 = vmul.f32 %v925, 0.9
    %v960 = vadd.f32 %v928, %v446
    %v961 = vadd.f32 %v929, %v447
    %v962 = vadd.f32 %v930, %v448
    %v963 = vadd.f32 %v931, %v449
    %v964 = vadd.f32 %v932, %v450
    %v965 = vadd.f32 %v933, %v451
    %v966 = vadd.f32 %v934, %v452
    %v967 = vadd.f32 %v935, %v453
    %v968 = vadd.f32 %v936, %v454
    %v969 = vadd.f32 %v937, %v455
    %v970 = vadd.f32 %v938, %v456
    %v971 = vadd.f32 %v939, %v457
    %v972 = vadd.f32 %v940, %v458
    %v973 = vadd.f32 %v941, %v459
    %v974 = vadd.f32 %v942, %v460
    %v975 = vadd.f32 %v943, %v461
    %v976 = vadd.f32 %v944, %v462
    %v977 = vadd.f32 %v945, %v463
    %v978 = vadd.f32 %v946, %v464
    %v979 = vadd.f32 %v947, %v465
    %v980 = vadd.f32 %v948, %v466
    %v981 = vadd.f32 %v949, %v467
    %v982 = vadd.f32 %v950, %v468
    %v983 = vadd.f32 %v951, %v469
    %v984 = vadd.f32 %v952, %v470
    %v985 = vadd.f32 %v953, %v471
    %v986 = vadd.f32 %v954, %v472
    %v987 = vadd.f32 %v955, %v473
    %v988 = vadd.f32 %v956, %v474
    %v989 = vadd.f32 %v957, %v475
    %v990 = vadd.f32 %v958, %v476
    %v991 = vadd.f32 %v959, %v477
    %992 = vst [vmem:[#allocation2] sm:$0xff] %v960
    %993 = vst [vmem:[#allocation2 + $0x8] sm:$0xff] %v961
    %994 = vst [vmem:[#allocation2 + $0x10] sm:$0xff] %v962
    %995 = vst [vmem:[#allocation2 + $0x18] sm:$0xff] %v963
    %996 = vst [vmem:[#allocation2 + $0x20] sm:$0xff] %v964
    %997 = vst [vmem:[#allocation2 + $0x28] sm:$0xff] %v965
    %998 = vst [vmem:[#allocation2 + $0x30] sm:$0xff] %v966
    %999 = vst [vmem:[#allocation2 + $0x38] sm:$0xff] %v967
    %1000 = vst [vmem:[#allocation2 + $0x40] sm:$0xff] %v968
    %1001 = vst [vmem:[#allocation2 + $0x48] sm:$0xff] %v969
    %1002 = vst [vmem:[#allocation2 + $0x50] sm:$0xff] %v970
    %1003 = vst [vmem:[#allocation2 + $0x58] sm:$0xff] %v971
    %1004 = vst [vmem:[#allocation2 + $0x60] sm:$0xff] %v972
    %1005 = vst [vmem:[#allocation2 + $0x68] sm:$0xff] %v973
    %1006 = vst [vmem:[#allocation2 + $0x70] sm:$0xff] %v974
    %1007 = vst [vmem:[#allocation2 + $0x78] sm:$0xff] %v975
    %1008 = vst [vmem:[#allocation2 + $0x80] sm:$0xff] %v976
    %1009 = vst [vmem:[#allocation2 + $0x88] sm:$0xff] %v977
    %1010 = vst [vmem:[#allocation2 + $0x90] sm:$0xff] %v978
    %1011 = vst [vmem:[#allocation2 + $0x98] sm:$0xff] %v979
    %1012 = vst [vmem:[#allocation2 + $0xa0] sm:$0xff] %v980
    %1013 = vst [vmem:[#allocation2 + $0xa8] sm:$0xff] %v981
    %1014 = vst [vmem:[#allocation2 + $0xb0] sm:$0xff] %v982
    %1015 = vst [vmem:[#allocation2 + $0xb8] sm:$0xff] %v983
    %1016 = vst [vmem:[#allocation2 + $0xc0] sm:$0xff] %v984
    %1017 = vst [vmem:[#allocation2 + $0xc8] sm:$0xff] %v985
    %1018 = vst [vmem:[#allocation2 + $0xd0] sm:$0xff] %v986
    %1019 = vst [vmem:[#allocation2 + $0xd8] sm:$0xff] %v987
    %1020 = vst [vmem:[#allocation2 + $0xe0] sm:$0xff] %v988
    %1021 = vst [vmem:[#allocation2 + $0xe8] sm:$0xff] %v989
    %1022 = vst [vmem:[#allocation2 + $0xf0] sm:$0xff] %v990
    %1023 = vst [vmem:[#allocation2 + $0xf8] sm:$0xff] %v991
    // Predicated region
    $region10: #{_propagate.1} parent=1 // pred_check
      _
    $region11: #{_propagate.1} parent=1 // pred_check_branch
      %1025 = sbr.rel (0) target = $region13
    $region12: #{_propagate.1} parent=1 // pred_region
      %s1027 = ssub.s32 4096, 4096
      %1028 = vsyncadd [#allocation3], %s1027
      %s1029 = sshll.u32 [#allocation2], 4
      %s1030 = int_to_ptr.vmem [resolvable:$true] %s1029
      %1035 = dma.vmem_to_hbm [thread:$0]  %s1030, 4096, %s2, [#allocation3], 128, 128, 8
    $region13: #{_propagate.1} parent=1 // pred_fallthru
      _
    // Predicated region
    $region14: #{_propagate.1} parent=1 // pred_check
      _
    $region15: #{_propagate.1} parent=1 // pred_check_branch
      %1037 = sbr.rel (0) target = $region17
    $region16: #{_propagate.1} parent=1 // pred_region
      %1038 = dma.done [#allocation3], 4096
    $region17: #{_propagate.1} parent=1 // pred_fallthru
      _
    %1039 = vsyncpa [#allocation3], 1

</llo_original>
